<compile_context>
chip_gen: v6e
topology: v6e:2x2x1
jax: 0.10.0
libtpu: 0.0.40
codegen_flags: <defaults>
</compile_context>

<pallas_src>
import math

import jax
import jax.numpy as jnp
from jax.experimental import pallas as pl
from jax.experimental.pallas import tpu as pltpu

_LANE = 128
_SUBLANE = 8
# Force >=2 grid steps (so v7x's two TensorCores both get work) whenever the
# total HBM traffic exceeds this and the batch can be split.
_TWO_CORE_SPLIT_BYTES = 2 << 20


def _cdiv(a: int, b: int) -> int:
    return -(-a // b)


def _round_up(a: int, b: int) -> int:
    return _cdiv(a, b) * b


def _vmem_tile_budget_bytes() -> int:
    """VMEM budget used to size (double-buffered) blocks, per TPU generation."""
    try:
        phys = int(pltpu.get_tpu_info().vmem_capacity_bytes)
    except Exception:  # no TPU info available -> assume the tightest (v7x)
        phys = 64 << 20
    if phys >= (128 << 20):      # v5e / v6e: 128 MiB physical VMEM
        return 32 << 20          # -> up to 8192 f32 pixel-rows per tile
    return 24 << 20              # v7x: 64 MiB physical, leave headroom


def _largest_divisor_leq(n: int, cap: int) -> int:
    cap = max(1, min(n, cap))
    for d in range(cap, 0, -1):
        if n % d == 0:
            return d
    return 1


def _c2g_rows_kernel(w_ref, x_ref, o_ref):
    """Lane-aligned path.

    w_ref : SMEM (3,) f32
    x_ref : VMEM (bb, 3, tr, 128) in the input's native dtype
    o_ref : VMEM (bb, tr, 128) f32
    """
    o_ref[...] = (
        w_ref[0] * x_ref[:, 0, :, :].astype(jnp.float32)
        + w_ref[1] * x_ref[:, 1, :, :].astype(jnp.float32)
        + w_ref[2] * x_ref[:, 2, :, :].astype(jnp.float32)
    )


def _c2g_flat_kernel(w_ref, x_ref, o_ref):
    """General (non-128-aligned) path.

    w_ref : SMEM (3,) f32
    x_ref : VMEM (bb, 3, tp) in the input's native dtype
    o_ref : VMEM (bb, 1, tp) f32
    """
    o_ref[:, 0, :] = (
        w_ref[0] * x_ref[:, 0, :].astype(jnp.float32)
        + w_ref[1] * x_ref[:, 1, :].astype(jnp.float32)
        + w_ref[2] * x_ref[:, 2, :].astype(jnp.float32)
    )


def color2gray(x: jax.Array, weight: jax.Array) -> jax.Array:
    """Pallas implementation of Color2GrayNet.forward.

    x      : (B, 3, H, W)  any real dtype (cast to f32 inside the kernel)
    weight : (1, 3, 1, 1)  (PyTorch Conv2d weight shape) or (3,)
    returns: (B, 1, H, W) float32
    """
    B, C, H, W = x.shape
    assert C == 3, "Color2GrayNet expects 3 input channels"
    P = H * W
    in_item = x.dtype.itemsize
    w_flat = weight.reshape(3).astype(jnp.float32)

    budget = _vmem_tile_budget_bytes()
    vmem_limit = budget + (8 << 20)

    cost = pl.CostEstimate(
        flops=5 * B * P,                         # 3 mul + 2 add per output px
        transcendentals=0,
        bytes_accessed=B * P * (3 * in_item + 4),
    )

    if P % _LANE == 0:
        # ---- lane-aligned fast path: free reshape, unmasked 128-lane stores.
        R = P // _LANE
        xf = x.reshape(B, 3, R, _LANE)
        row_bytes = _LANE * (3 * in_item + 4)            # in + out per pixel row
        max_rows = max(
            _SUBLANE, (budget // (2 * row_bytes) // _SUBLANE) * _SUBLANE
        )
        if R <= max_rows:
            tr, n_tiles = R, 1                           # full image per step
            per_img = 2 * _round_up(R, _SUBLANE) * row_bytes
            bb = _largest_divisor_leq(B, max(1, budget // per_img))
            if bb == B and B > 1 and B * R * row_bytes > _TWO_CORE_SPLIT_BYTES:
                bb = _largest_divisor_leq(B, max(1, B // 2))
        else:
            tr, bb = max_rows, 1
            n_tiles = _cdiv(R, tr)                       # ragged tail is masked
        grid = (B // bb, n_tiles)
        kernel = _c2g_rows_kernel
        in_block, in_idx = (bb, 3, tr, _LANE), (lambda i, j: (i, 0, j, 0))
        out_block, out_idx = (bb, tr, _LANE), (lambda i, j: (i, j, 0))
        out_shape = jax.ShapeDtypeStruct((B, R, _LANE), jnp.float32)
    else:
        # ---- general path (e.g. 28x28): flat pixel axis, no pad / slice.
        xf = x.reshape(B, 3, P)
        lanes = _round_up(P, _LANE)
        per_img = 2 * _SUBLANE * lanes * (in_item + 4)   # sublane-padded VMEM
        if per_img <= budget:
            tp, n_tiles = P, 1
            bb = _largest_divisor_leq(B, max(1, budget // per_img))
            if (bb == B and B > 1
                    and B * P * (3 * in_item + 4) > _TWO_CORE_SPLIT_BYTES):
                bb = _largest_divisor_leq(B, max(1, B // 2))
        else:
            bb = 1
            tp_max = budget // (2 * _SUBLANE * (in_item + 4))
            tp = max(_LANE, (tp_max // _LANE) * _LANE)
            n_tiles = _cdiv(P, tp)                       # ragged tail is masked
        grid = (B // bb, n_tiles)
        kernel = _c2g_flat_kernel
        in_block, in_idx = (bb, 3, tp), (lambda i, j: (i, 0, j))
        out_block, out_idx = (bb, 1, tp), (lambda i, j: (i, 0, j))
        out_shape = jax.ShapeDtypeStruct((B, 1, P), jnp.float32)

    single_step = (grid[0] * grid[1] == 1)

    def run(single_buffer: bool):
        extra = {}
        if single_buffer and hasattr(pl, "Buffered"):
            # One grid step -> a second pipeline buffer is pure VMEM waste.
            extra = dict(pipeline_mode=pl.Buffered(1))
        return pl.pallas_call(
            kernel,
            out_shape=out_shape,
            grid_spec=pltpu.PrefetchScalarGridSpec(
                num_scalar_prefetch=0,
                grid=grid,
                in_specs=[
                    # tiny weight vector lives in SMEM (scalar reads in kernel)
                    pl.BlockSpec(memory_space=pltpu.MemorySpace.SMEM),
                    pl.BlockSpec(in_block, in_idx, **extra),
                ],
                out_specs=pl.BlockSpec(out_block, out_idx, **extra),
            ),
            compiler_params=pltpu.CompilerParams(
                dimension_semantics=("parallel", "parallel"),
                vmem_limit_bytes=vmem_limit,
            ),
            cost_estimate=cost,
        )(w_flat, xf)

    try:
        out = run(single_step)
    except Exception:
        if not single_step:
            raise
        out = run(False)   # fallback if single-buffering is not supported

    return out.reshape(B, 1, H, W)


def init_weight(key: jax.Array, init: str = "random") -> jax.Array:
    """Deterministic parameter init matching Color2GrayNet.__init__."""
    if init == "luma":
        return jnp.array([0.299, 0.587, 0.114], jnp.float32).reshape(1, 3, 1, 1)
    # xavier_uniform_ on a Conv2d weight of shape (1, 3, 1, 1):
    # fan_in = 3, fan_out = 1 -> bound = sqrt(6 / (3 + 1))
    bound = math.sqrt(6.0 / (3.0 + 1.0))
    return jax.random.uniform(
        key, (1, 3, 1, 1), dtype=jnp.float32, minval=-bound, maxval=bound
    )


if __name__ == "__main__":
    key = jax.random.PRNGKey(0)
    k_x, k_w, k_x2 = jax.random.split(key, 3)

    # Primary case: the module's spec, (B, 3, 28, 28) in [-1, 1].
    B, C, H, W = 2, 3, 28, 28
    x = jax.random.uniform(k_x, (B, C, H, W), jnp.float32, minval=-1.0, maxval=1.0)
    weight = init_weight(k_w, init="random")

    out = jax.block_until_ready(color2gray(x, weight))
    ref = jnp.einsum("bchw,c->bhw", x, weight.reshape(3))[:, None, :, :]
    assert out.shape == (B, 1, H, W), out.shape
    assert jnp.allclose(out, ref, atol=1e-5, rtol=1e-5)

    # Secondary: exercise the lane-aligned (H*W % 128 == 0) fast path.
    x2 = jax.random.uniform(k_x2, (2, 3, 32, 32), jnp.float32, minval=-1.0, maxval=1.0)
    out2 = jax.block_until_ready(color2gray(x2, weight))
    ref2 = jnp.einsum("bchw,c->bhw", x2, weight.reshape(3))[:, None, :, :]
    assert jnp.allclose(out2, ref2, atol=1e-5, rtol=1e-5)

    # Luma-init sanity check.
    out_luma = jax.block_until_ready(color2gray(x, init_weight(k_w, init="luma")))
    ref_luma = 0.299 * x[:, 0] + 0.587 * x[:, 1] + 0.114 * x[:, 2]
    assert jnp.allclose(out_luma[:, 0], ref_luma, atol=1e-5, rtol=1e-5)

    print("KERNEL_OK")
</pallas_src>

<mosaic_0001>
module attributes {stable_mosaic.version = 11 : i64} {
  func.func @_c2g_flat_kernel(%arg0: i32, %arg1: i32, %arg2: memref<3xf32, #tpu.memory_space<smem>>, %arg3: memref<2x3x784xf32, #tpu.memory_space<vmem>>, %arg4: memref<2x1x784xf32, #tpu.memory_space<vmem>>) attributes {dimension_semantics = [#tpu.dimension_semantics<parallel>, #tpu.dimension_semantics<parallel>], iteration_bounds = array<i64: 1, 1>, scalar_prefetch = 0 : i64, scratch_operands = 0 : i64, tpu.core_type = #tpu.core_type<tc>, window_params = [{transform_indices = @transform_0, window_bounds = array<i64: 3>}, {pipeline_mode = #tpu.pipeline_mode<synchronous>, transform_indices = @transform_1, window_bounds = array<i64: 2, 3, 784>}, {pipeline_mode = #tpu.pipeline_mode<synchronous>, transform_indices = @transform_2, window_bounds = array<i64: 2, 1, 784>}]} {
    %c0 = arith.constant 0 : index
    %0 = memref.load %arg2[%c0] : memref<3xf32, #tpu.memory_space<smem>>
    %c0_0 = arith.constant 0 : index
    %c0_1 = arith.constant 0 : index
    %c0_2 = arith.constant 0 : index
    %1 = vector.load %arg3[%c0_0, %c0_1, %c0_2] : memref<2x3x784xf32, #tpu.memory_space<vmem>>, vector<2x1x784xf32>
    %2 = vector.shape_cast %1 : vector<2x1x784xf32> to vector<2x784xf32>
    %3 = vector.broadcast %0 : f32 to vector<2x784xf32>
    %4 = arith.mulf %3, %2 : vector<2x784xf32>
    %c1 = arith.constant 1 : index
    %5 = memref.load %arg2[%c1] : memref<3xf32, #tpu.memory_space<smem>>
    %c0_3 = arith.constant 0 : index
    %c1_4 = arith.constant 1 : index
    %c0_5 = arith.constant 0 : index
    %6 = vector.load %arg3[%c0_3, %c1_4, %c0_5] : memref<2x3x784xf32, #tpu.memory_space<vmem>>, vector<2x1x784xf32>
    %7 = vector.shape_cast %6 : vector<2x1x784xf32> to vector<2x784xf32>
    %8 = vector.broadcast %5 : f32 to vector<2x784xf32>
    %9 = arith.mulf %8, %7 : vector<2x784xf32>
    %10 = arith.addf %4, %9 : vector<2x784xf32>
    %c2 = arith.constant 2 : index
    %11 = memref.load %arg2[%c2] : memref<3xf32, #tpu.memory_space<smem>>
    %c0_6 = arith.constant 0 : index
    %c2_7 = arith.constant 2 : index
    %c0_8 = arith.constant 0 : index
    %12 = vector.load %arg3[%c0_6, %c2_7, %c0_8] : memref<2x3x784xf32, #tpu.memory_space<vmem>>, vector<2x1x784xf32>
    %13 = vector.shape_cast %12 : vector<2x1x784xf32> to vector<2x784xf32>
    %14 = vector.broadcast %11 : f32 to vector<2x784xf32>
    %15 = arith.mulf %14, %13 : vector<2x784xf32>
    %16 = arith.addf %10, %15 : vector<2x784xf32>
    %c0_9 = arith.constant 0 : index
    %c0_10 = arith.constant 0 : index
    %c0_11 = arith.constant 0 : index
    %17 = vector.load %arg4[%c0_9, %c0_10, %c0_11] : memref<2x1x784xf32, #tpu.memory_space<vmem>>, vector<2x1x784xf32>
    %18 = vector.shape_cast %17 : vector<2x1x784xf32> to vector<2x784xf32>
    %19 = vector.shape_cast %16 : vector<2x784xf32> to vector<2x1x784xf32>
    tpu.vector_store %arg4[%c0_9, %c0_10, %c0_11], %19 {strides = array<i32>} : memref<2x1x784xf32, #tpu.memory_space<vmem>>, vector<2x1x784xf32>,
    return
  }
  func.func @transform_0(%arg0: i32, %arg1: i32) -> i32 {
    %c0_i32 = arith.constant 0 : i32
    %c0_i32_0 = arith.constant 0 : i32
    return %c0_i32 : i32
  }
  func.func @transform_1(%arg0: i32, %arg1: i32) -> (i32, i32, i32) {
    %c0_i32 = arith.constant 0 : i32
    %c0_i32_0 = arith.constant 0 : i32
    return %arg0, %c0_i32, %arg1 : i32, i32, i32
  }
  func.func @transform_2(%arg0: i32, %arg1: i32) -> (i32, i32, i32) {
    %c0_i32 = arith.constant 0 : i32
    %c0_i32_0 = arith.constant 0 : i32
    return %arg0, %c0_i32, %arg1 : i32, i32, i32
  }
}

module attributes {stable_mosaic.version = 11 : i64} {
  func.func @_c2g_flat_kernel(%arg0: i32, %arg1: i32, %arg2: memref<3xf32, #tpu.memory_space<smem>>, %arg3: memref<2x3x784xf32, #tpu.memory_space<vmem>>, %arg4: memref<2x1x784xf32, #tpu.memory_space<vmem>>) attributes {dimension_semantics = [#tpu.dimension_semantics<parallel>, #tpu.dimension_semantics<parallel>], iteration_bounds = array<i64: 1, 1>, scalar_prefetch = 0 : i64, scratch_operands = 0 : i64, tpu.core_type = #tpu.core_type<tc>, window_params = [{transform_indices = @transform_0, window_bounds = array<i64: 3>}, {transform_indices = @transform_1, window_bounds = array<i64: 2, 3, 784>}, {transform_indices = @transform_2, window_bounds = array<i64: 2, 1, 784>}]} {
    %c0 = arith.constant 0 : index
    %0 = memref.load %arg2[%c0] : memref<3xf32, #tpu.memory_space<smem>>
    %c0_0 = arith.constant 0 : index
    %c0_1 = arith.constant 0 : index
    %c0_2 = arith.constant 0 : index
    %1 = vector.load %arg3[%c0_0, %c0_1, %c0_2] : memref<2x3x784xf32, #tpu.memory_space<vmem>>, vector<2x1x784xf32>
    %2 = vector.shape_cast %1 : vector<2x1x784xf32> to vector<2x784xf32>
    %3 = vector.broadcast %0 : f32 to vector<2x784xf32>
    %4 = arith.mulf %3, %2 : vector<2x784xf32>
    %c1 = arith.constant 1 : index
    %5 = memref.load %arg2[%c1] : memref<3xf32, #tpu.memory_space<smem>>
    %c0_3 = arith.constant 0 : index
    %c1_4 = arith.constant 1 : index
    %c0_5 = arith.constant 0 : index
    %6 = vector.load %arg3[%c0_3, %c1_4, %c0_5] : memref<2x3x784xf32, #tpu.memory_space<vmem>>, vector<2x1x784xf32>
    %7 = vector.shape_cast %6 : vector<2x1x784xf32> to vector<2x784xf32>
    %8 = vector.broadcast %5 : f32 to vector<2x784xf32>
    %9 = arith.mulf %8, %7 : vector<2x784xf32>
    %10 = arith.addf %4, %9 : vector<2x784xf32>
    %c2 = arith.constant 2 : index
    %11 = memref.load %arg2[%c2] : memref<3xf32, #tpu.memory_space<smem>>
    %c0_6 = arith.constant 0 : index
    %c2_7 = arith.constant 2 : index
    %c0_8 = arith.constant 0 : index
    %12 = vector.load %arg3[%c0_6, %c2_7, %c0_8] : memref<2x3x784xf32, #tpu.memory_space<vmem>>, vector<2x1x784xf32>
    %13 = vector.shape_cast %12 : vector<2x1x784xf32> to vector<2x784xf32>
    %14 = vector.broadcast %11 : f32 to vector<2x784xf32>
    %15 = arith.mulf %14, %13 : vector<2x784xf32>
    %16 = arith.addf %10, %15 : vector<2x784xf32>
    %c0_9 = arith.constant 0 : index
    %c0_10 = arith.constant 0 : index
    %c0_11 = arith.constant 0 : index
    %17 = vector.load %arg4[%c0_9, %c0_10, %c0_11] : memref<2x1x784xf32, #tpu.memory_space<vmem>>, vector<2x1x784xf32>
    %18 = vector.shape_cast %17 : vector<2x1x784xf32> to vector<2x784xf32>
    %19 = vector.shape_cast %16 : vector<2x784xf32> to vector<2x1x784xf32>
    tpu.vector_store %arg4[%c0_9, %c0_10, %c0_11], %19 {strides = array<i32>} : memref<2x1x784xf32, #tpu.memory_space<vmem>>, vector<2x1x784xf32>,
    return
  }
  func.func @transform_0(%arg0: i32, %arg1: i32) -> i32 {
    %c0_i32 = arith.constant 0 : i32
    %c0_i32_0 = arith.constant 0 : i32
    return %c0_i32 : i32
  }
  func.func @transform_1(%arg0: i32, %arg1: i32) -> (i32, i32, i32) {
    %c0_i32 = arith.constant 0 : i32
    %c0_i32_0 = arith.constant 0 : i32
    return %arg0, %c0_i32, %arg1 : i32, i32, i32
  }
  func.func @transform_2(%arg0: i32, %arg1: i32) -> (i32, i32, i32) {
    %c0_i32 = arith.constant 0 : i32
    %c0_i32_0 = arith.constant 0 : i32
    return %arg0, %c0_i32, %arg1 : i32, i32, i32
  }
}

</mosaic_0001>

<llo_original>
// kernel: tpu_custom_call.1
$region0: #{tpu_custom_call.1}
  #allocation0 [shape = 'u32[]', space=smem, size = 0x4, offset = 0x4, fixed_abs, tag = 'smem constant byte address 0x4 - core index']
  #allocation1 [shape = 'u32[144,128]{1,0:T(1,128)}', space=vmem, size = 0x12000, scoped, tag = 'internal scratch']
  %s0 = inlined_call_operand.vmem [shape: f32[3], index: 0, kind: input, shape index: {}]
  %s1 = inlined_call_operand.vmem [shape: f32[2,3,784], index: 1, kind: input, shape index: {}]
  %s2 = inlined_call_operand.hbm [shape: f32[2,1,784], index: 2, kind: output, shape index: {}]
  %s3 = sld [smem:[#allocation0]]
  $region22: #{tpu_custom_call.1} parent=0
    _
  %s5 = ssub.s32 1, %s3
  %s6 = scalar_select 0, %s5, %s3
  $region1: #{tpu_custom_call.1} parent=0
    #allocation2 [shape = 'u8[512]{0}', space=smem, size = 0x200, scoped, tag = 'input window, operand 0, single buffered']
    #allocation3 [shape = 's32[1]{0}', space=sflag, size = 0x4, scoped, tag = 'scoped memory for tpu_custom_call.1']
    #allocation4 [shape = 's32[1]{0}', space=sflag, size = 0x4, scoped, tag = 'scoped memory for tpu_custom_call.1']
    #allocation5 [shape = 'u8[7168]{0}', space=vmem, size = 0x1c00, scoped, tag = 'output window, operand 0, single buffered']
    %7 = vsyncpa [#allocation4], 0
    %8 = vsyncpa [#allocation3], 0
    // Predicated region
    $region2: #{tpu_custom_call.1} parent=1 // pred_check
      _
    $region3: #{tpu_custom_call.1} parent=1 // pred_check_branch
      %10 = sbr.rel (0) target = $region5
    $region4: #{tpu_custom_call.1} parent=1 // pred_region
      %s12 = ssub.s32 16, 16
      %13 = vsyncadd [#allocation4], %s12
      %s15 = sshll.u32 %s0, 4
      %s16 = int_to_ptr.vmem [resolvable:$true] %s15
      %18 = dma.vmem_to_smem %s16, 16, [#allocation2], [#allocation4]
    $region5: #{tpu_custom_call.1} parent=1 // pred_fallthru
      _
    // Predicated region
    $region6: #{tpu_custom_call.1} parent=1 // pred_check
      _
    $region7: #{tpu_custom_call.1} parent=1 // pred_check_branch
      %20 = sbr.rel (0) target = $region9
    $region8: #{tpu_custom_call.1} parent=1 // pred_region
      _
    $region9: #{tpu_custom_call.1} parent=1 // pred_fallthru
      _
    // Predicated region
    $region10: #{tpu_custom_call.1} parent=1 // pred_check
      _
    $region11: #{tpu_custom_call.1} parent=1 // pred_check_branch
      %22 = sbr.rel (0) target = $region13
    $region12: #{tpu_custom_call.1} parent=1 // pred_region
      %23 = dma.done [#allocation4], 16
    $region13: #{tpu_custom_call.1} parent=1 // pred_fallthru
      _
    %24 = sfence
    %s25 = sld [smem:[#allocation2]]
    %v26 = vld [vmem:[%s1] ss:$4 sm:$0x7f]
    %s27 = scalar_lea.vmem %s1, 28
    %v28 = vld [vmem:[%s27] ss:$4 sm:$0x7f]
    %v29 = vstv %s25
    %v30 = vmul.f32 %v29, %v26
    %v31 = vmul.f32 %v29, %v28
    %s32 = sld [smem:[#allocation2 + $0x1]]
    %s33 = scalar_lea.vmem %s1, 1
    %v34 = vld [vmem:[%s33] ss:$4 sm:$0x7f]
    %s35 = scalar_lea.vmem %s1, 29
    %v36 = vld [vmem:[%s35] ss:$4 sm:$0x7f]
    %v37 = vstv %s32
    %v38 = vmul.f32 %v37, %v34
    %v39 = vmul.f32 %v37, %v36
    %v40 = vadd.f32 %v30, %v38
    %v41 = vadd.f32 %v31, %v39
    %s42 = sld [smem:[#allocation2 + $0x2]]
    %s43 = scalar_lea.vmem %s1, 2
    %v44 = vld [vmem:[%s43] ss:$4 sm:$0x7f]
    %s45 = scalar_lea.vmem %s1, 30
    %v46 = vld [vmem:[%s45] ss:$4 sm:$0x7f]
    %v47 = vstv %s42
    %v48 = vmul.f32 %v47, %v44
    %v49 = vmul.f32 %v47, %v46
    %v50 = vadd.f32 %v40, %v48
    %v51 = vadd.f32 %v41, %v49
    %v52 = vlaneseq
    %vm53 = vcmp.ge.s32.totalorder %v52, 0
    %vm54 = vcmp.lt.s32.totalorder %v52, 784
    %vm55 = vmand %vm53, %vm54
    %56 = vst.msk [vmem:[#allocation5] sm:$0x7f] %vm55, %v50
    %57 = vst.msk [vmem:[#allocation5 + $0x7] sm:$0x7f] %vm55, %v51
    // Predicated region
    $region14: #{tpu_custom_call.1} parent=1 // pred_check
      _
    $region15: #{tpu_custom_call.1} parent=1 // pred_check_branch
      %59 = sbr.rel (0) target = $region17
    $region16: #{tpu_custom_call.1} parent=1 // pred_region
      %s61 = ssub.s32 224, 224
      %62 = vsyncadd [#allocation3], %s61
      %s63 = sshll.u32 [#allocation5], 4
      %s64 = int_to_ptr.vmem [resolvable:$true] %s63
      %69 = dma.vmem_to_hbm [thread:$0]  %s64, 224, %s2, [#allocation3], 112, 112, 7
    $region17: #{tpu_custom_call.1} parent=1 // pred_fallthru
      _
    // Predicated region
    $region18: #{tpu_custom_call.1} parent=1 // pred_check
      _
    $region19: #{tpu_custom_call.1} parent=1 // pred_check_branch
      %71 = sbr.rel (0) target = $region21
    $region20: #{tpu_custom_call.1} parent=1 // pred_region
      %72 = dma.done [#allocation3], 224
    $region21: #{tpu_custom_call.1} parent=1 // pred_fallthru
      _
    %73 = vsyncpa [#allocation3], 1
    %74 = vsyncpa [#allocation4], 1

// kernel: tpu_custom_call.1
$region0: #{tpu_custom_call.1}
  #allocation0 [shape = 'u32[]', space=smem, size = 0x4, offset = 0x4, fixed_abs, tag = 'smem constant byte address 0x4 - core index']
  #allocation1 [shape = 'u32[144,128]{1,0:T(1,128)}', space=vmem, size = 0x12000, scoped, tag = 'internal scratch']
  %s0 = inlined_call_operand.vmem [shape: f32[3], index: 0, kind: input, shape index: {}]
  %s1 = inlined_call_operand.vmem [shape: f32[2,3,784], index: 1, kind: input, shape index: {}]
  %s2 = inlined_call_operand.hbm [shape: f32[2,1,784], index: 2, kind: output, shape index: {}]
  %s3 = sld [smem:[#allocation0]]
  $region22: #{tpu_custom_call.1} parent=0
    _
  %s5 = ssub.s32 1, %s3
  %s6 = scalar_select 0, %s5, %s3
  $region1: #{tpu_custom_call.1} parent=0
    #allocation2 [shape = 'u8[512]{0}', space=smem, size = 0x200, scoped, tag = 'input window, operand 0, single buffered']
    #allocation3 [shape = 's32[1]{0}', space=sflag, size = 0x4, scoped, tag = 'scoped memory for tpu_custom_call.1']
    #allocation4 [shape = 's32[1]{0}', space=sflag, size = 0x4, scoped, tag = 'scoped memory for tpu_custom_call.1']
    #allocation5 [shape = 'u8[7168]{0}', space=vmem, size = 0x1c00, scoped, tag = 'output window, operand 0, single buffered']
    %7 = vsyncpa [#allocation4], 0
    %8 = vsyncpa [#allocation3], 0
    // Predicated region
    $region2: #{tpu_custom_call.1} parent=1 // pred_check
      _
    $region3: #{tpu_custom_call.1} parent=1 // pred_check_branch
      %10 = sbr.rel (0) target = $region5
    $region4: #{tpu_custom_call.1} parent=1 // pred_region
      %s12 = ssub.s32 16, 16
      %13 = vsyncadd [#allocation4], %s12
      %s15 = sshll.u32 %s0, 4
      %s16 = int_to_ptr.vmem [resolvable:$true] %s15
      %18 = dma.vmem_to_smem %s16, 16, [#allocation2], [#allocation4]
    $region5: #{tpu_custom_call.1} parent=1 // pred_fallthru
      _
    // Predicated region
    $region6: #{tpu_custom_call.1} parent=1 // pred_check
      _
    $region7: #{tpu_custom_call.1} parent=1 // pred_check_branch
      %20 = sbr.rel (0) target = $region9
    $region8: #{tpu_custom_call.1} parent=1 // pred_region
      _
    $region9: #{tpu_custom_call.1} parent=1 // pred_fallthru
      _
    // Predicated region
    $region10: #{tpu_custom_call.1} parent=1 // pred_check
      _
    $region11: #{tpu_custom_call.1} parent=1 // pred_check_branch
      %22 = sbr.rel (0) target = $region13
    $region12: #{tpu_custom_call.1} parent=1 // pred_region
      %23 = dma.done [#allocation4], 16
    $region13: #{tpu_custom_call.1} parent=1 // pred_fallthru
      _
    %24 = sfence
    %s25 = sld [smem:[#allocation2]]
    %v26 = vld [vmem:[%s1] ss:$4 sm:$0x7f]
    %s27 = scalar_lea.vmem %s1, 28
    %v28 = vld [vmem:[%s27] ss:$4 sm:$0x7f]
    %v29 = vstv %s25
    %v30 = vmul.f32 %v29, %v26
    %v31 = vmul.f32 %v29, %v28
    %s32 = sld [smem:[#allocation2 + $0x1]]
    %s33 = scalar_lea.vmem %s1, 1
    %v34 = vld [vmem:[%s33] ss:$4 sm:$0x7f]
    %s35 = scalar_lea.vmem %s1, 29
    %v36 = vld [vmem:[%s35] ss:$4 sm:$0x7f]
    %v37 = vstv %s32
    %v38 = vmul.f32 %v37, %v34
    %v39 = vmul.f32 %v37, %v36
    %v40 = vadd.f32 %v30, %v38
    %v41 = vadd.f32 %v31, %v39
    %s42 = sld [smem:[#allocation2 + $0x2]]
    %s43 = scalar_lea.vmem %s1, 2
    %v44 = vld [vmem:[%s43] ss:$4 sm:$0x7f]
    %s45 = scalar_lea.vmem %s1, 30
    %v46 = vld [vmem:[%s45] ss:$4 sm:$0x7f]
    %v47 = vstv %s42
    %v48 = vmul.f32 %v47, %v44
    %v49 = vmul.f32 %v47, %v46
    %v50 = vadd.f32 %v40, %v48
    %v51 = vadd.f32 %v41, %v49
    %v52 = vlaneseq
    %vm53 = vcmp.ge.s32.totalorder %v52, 0
    %vm54 = vcmp.lt.s32.totalorder %v52, 784
    %vm55 = vmand %vm53, %vm54
    %56 = vst.msk [vmem:[#allocation5] sm:$0x7f] %vm55, %v50
    %57 = vst.msk [vmem:[#allocation5 + $0x7] sm:$0x7f] %vm55, %v51
    // Predicated region
    $region14: #{tpu_custom_call.1} parent=1 // pred_check
      _
    $region15: #{tpu_custom_call.1} parent=1 // pred_check_branch
      %59 = sbr.rel (0) target = $region17
    $region16: #{tpu_custom_call.1} parent=1 // pred_region
      %s61 = ssub.s32 224, 224
      %62 = vsyncadd [#allocation3], %s61
      %s63 = sshll.u32 [#allocation5], 4
      %s64 = int_to_ptr.vmem [resolvable:$true] %s63
      %69 = dma.vmem_to_hbm [thread:$0]  %s64, 224, %s2, [#allocation3], 112, 112, 7
    $region17: #{tpu_custom_call.1} parent=1 // pred_fallthru
      _
    // Predicated region
    $region18: #{tpu_custom_call.1} parent=1 // pred_check
      _
    $region19: #{tpu_custom_call.1} parent=1 // pred_check_branch
      %71 = sbr.rel (0) target = $region21
    $region20: #{tpu_custom_call.1} parent=1 // pred_region
      %72 = dma.done [#allocation3], 224
    $region21: #{tpu_custom_call.1} parent=1 // pred_fallthru
      _
    %73 = vsyncpa [#allocation3], 1
    %74 = vsyncpa [#allocation4], 1

</llo_original>
